<compile_context>
chip_gen: v6e
topology: v6e:2x2x1
jax: 0.10.0
libtpu: 0.0.40
codegen_flags: <defaults>
</compile_context>

<pallas_src>
import functools

import jax
import jax.numpy as jnp
from jax.experimental import pallas as pl
from jax.experimental.pallas import tpu as pltpu


def _round_up(x, m):
    return ((x + m - 1) // m) * m


def _actor_kernel(x_ref, w1_ref, b1_ref, w2_ref, b2_ref, w3_ref, b3_ref,
                  o_ref, *, maxaction):
    # All matmuls in f32 with f32 accumulation (overhead-bound kernel; f32
    # matches the PyTorch f32 Actor nearly exactly).
    x = x_ref[...]

    # Layer 1: relu(x @ W1 + b1)        (out cols lane-padded to 128)
    h1 = jnp.maximum(
        jnp.dot(x, w1_ref[...], preferred_element_type=jnp.float32)
        + b1_ref[...], 0.0)

    # Layer 2: relu(h1 @ W2 + b2)       (K=128-aligned, out cols padded to 384)
    h2 = jnp.maximum(
        jnp.dot(h1, w2_ref[...], preferred_element_type=jnp.float32)
        + b2_ref[...], 0.0)

    # Layer 3: tanh(h2 @ W3 + b3) * maxaction   (out cols lane-padded to 128)
    a = jnp.tanh(
        jnp.dot(h2, w3_ref[...], preferred_element_type=jnp.float32)
        + b3_ref[...]) * maxaction

    o_ref[...] = a.astype(o_ref.dtype)


def actor_forward(state, params, maxaction, *, tile_b=128):
    """state: [B, state_dim] float32. params: dict of W1,b1,W2,b2,W3,b3 (f32)."""
    B, state_dim = state.shape
    net_width = params["w1"].shape[1]
    hid2 = params["w2"].shape[1]           # 300 in the reference module
    action_dim = params["w3"].shape[1]

    # Lane-dense padding of every feature dimension to a multiple of 128.
    # Zero-padded columns stay exactly zero through bias-add + relu, and the
    # zero-padded weight rows they feed contribute nothing downstream.
    hid1_pad = _round_up(net_width, 128)
    hid2_pad = _round_up(hid2, 128)
    out_pad = _round_up(action_dim, 128)

    f32 = jnp.float32
    w1 = jnp.pad(params["w1"], ((0, 0), (0, hid1_pad - net_width))).astype(f32)
    b1 = jnp.pad(params["b1"], ((0, 0), (0, hid1_pad - net_width))).astype(f32)
    w2 = jnp.pad(params["w2"], ((0, hid1_pad - net_width),
                                (0, hid2_pad - hid2))).astype(f32)
    b2 = jnp.pad(params["b2"], ((0, 0), (0, hid2_pad - hid2))).astype(f32)
    w3 = jnp.pad(params["w3"], ((0, hid2_pad - hid2),
                                (0, out_pad - action_dim))).astype(f32)
    b3 = jnp.pad(params["b3"], ((0, 0), (0, out_pad - action_dim))).astype(f32)

    # Batch tiling: multiple of 8 sublanes, capped at tile_b; when B >= 16,
    # force at least 2 grid steps so v7x's two TensorCores both get work.
    tb = min(tile_b, _round_up(B, 8))
    if B >= 16:
        tb = min(tb, _round_up((B + 1) // 2, 8))
    b_pad = _round_up(B, tb)
    x = state if b_pad == B else jnp.pad(state, ((0, b_pad - B), (0, 0)))
    grid = (b_pad // tb,)

    kernel = functools.partial(_actor_kernel, maxaction=float(maxaction))

    def resident(shape):
        return pl.BlockSpec(shape, lambda i: (0, 0))

    out = pl.pallas_call(
        kernel,
        out_shape=jax.ShapeDtypeStruct((b_pad, out_pad), jnp.float32),
        grid=grid,
        in_specs=[
            pl.BlockSpec((tb, state_dim), lambda i: (i, 0)),   # state tile
            resident(w1.shape), resident(b1.shape),            # layer 1
            resident(w2.shape), resident(b2.shape),            # layer 2
            resident(w3.shape), resident(b3.shape),            # layer 3
        ],
        out_specs=pl.BlockSpec((tb, out_pad), lambda i: (i, 0)),
        compiler_params=pltpu.CompilerParams(
            dimension_semantics=("parallel",)),
    )(x, w1, b1, w2, b2, w3, b3)

    # Padded batch rows / output columns are garbage / zero — slice them off.
    return out[:B, :action_dim]


def init_actor_params(key, state_dim, net_width, action_dim):
    """Deterministic init mimicking PyTorch Linear default (U[-1/sqrt(fan_in), +])."""
    dims = [(state_dim, net_width), (net_width, 300), (300, action_dim)]
    params = {}
    for idx, (fan_in, fan_out) in enumerate(dims, start=1):
        key, kw, kb = jax.random.split(key, 3)
        bound = 1.0 / jnp.sqrt(float(fan_in))
        params[f"w{idx}"] = jax.random.uniform(
            kw, (fan_in, fan_out), jnp.float32, -bound, bound)
        params[f"b{idx}"] = jax.random.uniform(
            kb, (1, fan_out), jnp.float32, -bound, bound)
    return params


def actor_forward_ref(state, params, maxaction):
    """Pure-JAX f32 reference (matches the PyTorch f32 Actor)."""
    h1 = jax.nn.relu(state @ params["w1"] + params["b1"])
    h2 = jax.nn.relu(h1 @ params["w2"] + params["b2"])
    return jnp.tanh(h2 @ params["w3"] + params["b3"]) * maxaction


if __name__ == "__main__":
    state_dim = 16
    net_width = 32
    action_dim = 4
    maxaction = 2.0

    key = jax.random.PRNGKey(0)
    key, kstate, kstate2 = jax.random.split(key, 3)
    params = init_actor_params(key, state_dim, net_width, action_dim)

    # Small case (grid of 1 step, batch padded to 8 sublanes).
    state = jax.random.normal(kstate, (2, state_dim), jnp.float32)
    out = jax.block_until_ready(actor_forward(state, params, maxaction))
    ref = actor_forward_ref(state, params, maxaction)
    assert out.shape == (2, action_dim)
    assert jnp.allclose(out, ref, atol=1e-5, rtol=1e-5)

    # Multi-tile case (exercises batch padding + >=2 grid steps).
    state2 = jax.random.normal(kstate2, (130, state_dim), jnp.float32)
    out2 = jax.block_until_ready(actor_forward(state2, params, maxaction))
    ref2 = actor_forward_ref(state2, params, maxaction)
    assert out2.shape == (130, action_dim)
    assert jnp.allclose(out2, ref2, atol=1e-5, rtol=1e-5)

    print("KERNEL_OK")
</pallas_src>

<mosaic_0001>
module attributes {stable_mosaic.version = 11 : i64} {
  func.func @_actor_kernel(%arg0: i32, %arg1: memref<8x16xf32, #tpu.memory_space<vmem>>, %arg2: memref<16x128xf32, #tpu.memory_space<vmem>>, %arg3: memref<1x128xf32, #tpu.memory_space<vmem>>, %arg4: memref<128x384xf32, #tpu.memory_space<vmem>>, %arg5: memref<1x384xf32, #tpu.memory_space<vmem>>, %arg6: memref<384x128xf32, #tpu.memory_space<vmem>>, %arg7: memref<1x128xf32, #tpu.memory_space<vmem>>, %arg8: memref<8x128xf32, #tpu.memory_space<vmem>>) attributes {dimension_semantics = [#tpu.dimension_semantics<parallel>], iteration_bounds = array<i64: 1>, scalar_prefetch = 0 : i64, scratch_operands = 0 : i64, tpu.core_type = #tpu.core_type<tc>, window_params = [{transform_indices = @transform_0, window_bounds = array<i64: 8, 16>}, {pipeline_mode = #tpu.pipeline_mode<synchronous>, transform_indices = @transform_1, window_bounds = array<i64: 16, 128>}, {pipeline_mode = #tpu.pipeline_mode<synchronous>, transform_indices = @transform_2, window_bounds = array<i64: 1, 128>}, {pipeline_mode = #tpu.pipeline_mode<synchronous>, transform_indices = @transform_3, window_bounds = array<i64: 128, 384>}, {pipeline_mode = #tpu.pipeline_mode<synchronous>, transform_indices = @transform_4, window_bounds = array<i64: 1, 384>}, {pipeline_mode = #tpu.pipeline_mode<synchronous>, transform_indices = @transform_5, window_bounds = array<i64: 384, 128>}, {pipeline_mode = #tpu.pipeline_mode<synchronous>, transform_indices = @transform_6, window_bounds = array<i64: 1, 128>}, {transform_indices = @transform_7, window_bounds = array<i64: 8, 128>}]} {
    %c0 = arith.constant 0 : index
    %c0_0 = arith.constant 0 : index
    %0 = vector.load %arg1[%c0, %c0_0] : memref<8x16xf32, #tpu.memory_space<vmem>>, vector<8x16xf32>
    %c0_1 = arith.constant 0 : index
    %c0_2 = arith.constant 0 : index
    %1 = vector.load %arg2[%c0_1, %c0_2] : memref<16x128xf32, #tpu.memory_space<vmem>>, vector<16x128xf32>
    %cst = arith.constant dense<0.000000e+00> : vector<8x128xf32>
    %2 = tpu.matmul %0, %1, %cst {dimension_numbers = #tpu.dot_dimension_numbers<[1], [0], [0], [1], [0, 0, 1, 1], [], []>} : vector<8x16xf32>, vector<16x128xf32>, vector<8x128xf32> -> vector<8x128xf32>
    %c0_3 = arith.constant 0 : index
    %c0_4 = arith.constant 0 : index
    %3 = vector.load %arg3[%c0_3, %c0_4] : memref<1x128xf32, #tpu.memory_space<vmem>>, vector<1x128xf32>
    %4 = vector.broadcast %3 : vector<1x128xf32> to vector<8x128xf32>
    %5 = arith.addf %2, %4 : vector<8x128xf32>
    %cst_5 = arith.constant 0.000000e+00 : f32
    %6 = vector.broadcast %cst_5 : f32 to vector<8x128xf32>
    %7 = arith.maximumf %5, %6 : vector<8x128xf32>
    %c0_6 = arith.constant 0 : index
    %c0_7 = arith.constant 0 : index
    %8 = vector.load %arg4[%c0_6, %c0_7] : memref<128x384xf32, #tpu.memory_space<vmem>>, vector<128x384xf32>
    %cst_8 = arith.constant dense<0.000000e+00> : vector<8x384xf32>
    %9 = tpu.matmul %7, %8, %cst_8 {dimension_numbers = #tpu.dot_dimension_numbers<[1], [0], [0], [1], [0, 0, 1, 1], [], []>} : vector<8x128xf32>, vector<128x384xf32>, vector<8x384xf32> -> vector<8x384xf32>
    %c0_9 = arith.constant 0 : index
    %c0_10 = arith.constant 0 : index
    %10 = vector.load %arg5[%c0_9, %c0_10] : memref<1x384xf32, #tpu.memory_space<vmem>>, vector<1x384xf32>
    %11 = vector.broadcast %10 : vector<1x384xf32> to vector<8x384xf32>
    %12 = arith.addf %9, %11 : vector<8x384xf32>
    %cst_11 = arith.constant 0.000000e+00 : f32
    %13 = vector.broadcast %cst_11 : f32 to vector<8x384xf32>
    %14 = arith.maximumf %12, %13 : vector<8x384xf32>
    %c0_12 = arith.constant 0 : index
    %c0_13 = arith.constant 0 : index
    %15 = vector.load %arg6[%c0_12, %c0_13] : memref<384x128xf32, #tpu.memory_space<vmem>>, vector<384x128xf32>
    %cst_14 = arith.constant dense<0.000000e+00> : vector<8x128xf32>
    %16 = tpu.matmul %14, %15, %cst_14 {dimension_numbers = #tpu.dot_dimension_numbers<[1], [0], [0], [1], [0, 0, 1, 1], [], []>} : vector<8x384xf32>, vector<384x128xf32>, vector<8x128xf32> -> vector<8x128xf32>
    %c0_15 = arith.constant 0 : index
    %c0_16 = arith.constant 0 : index
    %17 = vector.load %arg7[%c0_15, %c0_16] : memref<1x128xf32, #tpu.memory_space<vmem>>, vector<1x128xf32>
    %18 = vector.broadcast %17 : vector<1x128xf32> to vector<8x128xf32>
    %19 = arith.addf %16, %18 : vector<8x128xf32>
    %20 = math.tanh %19 : vector<8x128xf32>
    %cst_17 = arith.constant 2.000000e+00 : f32
    %21 = vector.broadcast %cst_17 : f32 to vector<8x128xf32>
    %22 = arith.mulf %20, %21 : vector<8x128xf32>
    %c0_18 = arith.constant 0 : index
    %c0_19 = arith.constant 0 : index
    %23 = vector.load %arg8[%c0_18, %c0_19] : memref<8x128xf32, #tpu.memory_space<vmem>>, vector<8x128xf32>
    tpu.vector_store %arg8[%c0_18, %c0_19], %22 {strides = array<i32>} : memref<8x128xf32, #tpu.memory_space<vmem>>, vector<8x128xf32>,
    return
  }
  func.func @transform_0(%arg0: i32) -> (i32, i32) {
    %c0_i32 = arith.constant 0 : i32
    %c0_i32_0 = arith.constant 0 : i32
    return %arg0, %c0_i32 : i32, i32
  }
  func.func @transform_1(%arg0: i32) -> (i32, i32) {
    %c0_i32 = arith.constant 0 : i32
    %c0_i32_0 = arith.constant 0 : i32
    %c0_i32_1 = arith.constant 0 : i32
    return %c0_i32, %c0_i32_0 : i32, i32
  }
  func.func @transform_2(%arg0: i32) -> (i32, i32) {
    %c0_i32 = arith.constant 0 : i32
    %c0_i32_0 = arith.constant 0 : i32
    %c0_i32_1 = arith.constant 0 : i32
    return %c0_i32, %c0_i32_0 : i32, i32
  }
  func.func @transform_3(%arg0: i32) -> (i32, i32) {
    %c0_i32 = arith.constant 0 : i32
    %c0_i32_0 = arith.constant 0 : i32
    %c0_i32_1 = arith.constant 0 : i32
    return %c0_i32, %c0_i32_0 : i32, i32
  }
  func.func @transform_4(%arg0: i32) -> (i32, i32) {
    %c0_i32 = arith.constant 0 : i32
    %c0_i32_0 = arith.constant 0 : i32
    %c0_i32_1 = arith.constant 0 : i32
    return %c0_i32, %c0_i32_0 : i32, i32
  }
  func.func @transform_5(%arg0: i32) -> (i32, i32) {
    %c0_i32 = arith.constant 0 : i32
    %c0_i32_0 = arith.constant 0 : i32
    %c0_i32_1 = arith.constant 0 : i32
    return %c0_i32, %c0_i32_0 : i32, i32
  }
  func.func @transform_6(%arg0: i32) -> (i32, i32) {
    %c0_i32 = arith.constant 0 : i32
    %c0_i32_0 = arith.constant 0 : i32
    %c0_i32_1 = arith.constant 0 : i32
    return %c0_i32, %c0_i32_0 : i32, i32
  }
  func.func @transform_7(%arg0: i32) -> (i32, i32) {
    %c0_i32 = arith.constant 0 : i32
    %c0_i32_0 = arith.constant 0 : i32
    return %arg0, %c0_i32 : i32, i32
  }
}

</mosaic_0001>

<llo_original>
// kernel: tpu_custom_call.1
$region0: #{tpu_custom_call.1}
  #allocation0 [shape = 'u32[]', space=smem, size = 0x4, offset = 0x4, fixed_abs, tag = 'smem constant byte address 0x4 - core index']
  #allocation1 [shape = 'u32[144,128]{1,0:T(1,128)}', space=vmem, size = 0x12000, scoped, tag = 'internal scratch']
  %s0 = inlined_call_operand.hbm [shape: f32[8,16], index: 0, kind: input, shape index: {}]
  %s1 = inlined_call_operand.hbm [shape: f32[16,128], index: 1, kind: input, shape index: {}]
  %s2 = inlined_call_operand.vmem [shape: f32[1,128], index: 2, kind: input, shape index: {}]
  %s3 = inlined_call_operand.hbm [shape: f32[128,384], index: 3, kind: input, shape index: {}]
  %s4 = inlined_call_operand.vmem [shape: f32[1,384], index: 4, kind: input, shape index: {}]
  %s5 = inlined_call_operand.hbm [shape: f32[384,128], index: 5, kind: input, shape index: {}]
  %s6 = inlined_call_operand.vmem [shape: f32[1,128], index: 6, kind: input, shape index: {}]
  %s7 = inlined_call_operand.hbm [shape: f32[8,128], index: 7, kind: output, shape index: {}]
  %s8 = sld [smem:[#allocation0]]
  $region54: #{tpu_custom_call.1} parent=0
    _
  %s10 = ssub.s32 1, %s8
  %s11 = scalar_select 0, %s10, %s8
  $region1: #{tpu_custom_call.1} parent=0
    #allocation2 [shape = 'u8[4096]{0}', space=vmem, size = 0x1000, scoped, tag = 'input window, operand 0, single buffered']
    #allocation3 [shape = 's32[1]{0}', space=sflag, size = 0x4, scoped, tag = 'scoped memory for tpu_custom_call.1']
    #allocation4 [shape = 's32[1]{0}', space=sflag, size = 0x4, scoped, tag = 'scoped memory for tpu_custom_call.1']
    #allocation5 [shape = 'u8[8192]{0}', space=vmem, size = 0x2000, scoped, tag = 'input window, operand 1, single buffered']
    #allocation6 [shape = 's32[1]{0}', space=sflag, size = 0x4, scoped, tag = 'scoped memory for tpu_custom_call.1']
    #allocation7 [shape = 'u8[196608]{0}', space=vmem, size = 0x30000, scoped, tag = 'input window, operand 3, single buffered']
    #allocation8 [shape = 'u8[196608]{0}', space=vmem, size = 0x30000, scoped, tag = 'input window, operand 5, single buffered']
    #allocation9 [shape = 's32[1]{0}', space=sflag, size = 0x4, scoped, tag = 'scoped memory for tpu_custom_call.1']
    #allocation10 [shape = 'u8[4096]{0}', space=vmem, size = 0x1000, scoped, tag = 'output window, operand 0, single buffered']
    %12 = vsyncpa [#allocation3], 0
    %13 = vsyncpa [#allocation6], 0
    %14 = vsyncpa [#allocation9], 0
    %15 = vsyncpa [#allocation4], 0
    // Predicated region
    $region2: #{tpu_custom_call.1} parent=1 // pred_check
      _
    $region3: #{tpu_custom_call.1} parent=1 // pred_check_branch
      %17 = sbr.rel (0) target = $region5
    $region4: #{tpu_custom_call.1} parent=1 // pred_region
      %s19 = ssub.s32 128, 128
      %20 = vsyncadd [#allocation3], %s19
      %s22 = sshll.u32 [#allocation2], 4
      %s23 = int_to_ptr.vmem [resolvable:$true] %s22
      %25 = dma.hbm_to_vmem [thread:$0]  %s0, 128, %s23, [#allocation3]
    $region5: #{tpu_custom_call.1} parent=1 // pred_fallthru
      _
    // Predicated region
    $region6: #{tpu_custom_call.1} parent=1 // pred_check
      _
    $region7: #{tpu_custom_call.1} parent=1 // pred_check_branch
      %27 = sbr.rel (0) target = $region9
    $region8: #{tpu_custom_call.1} parent=1 // pred_region
      %s29 = ssub.s32 256, 256
      %30 = vsyncadd [#allocation6], %s29
      %s31 = sshll.u32 [#allocation5], 4
      %s32 = int_to_ptr.vmem [resolvable:$true] %s31
      %37 = dma.hbm_to_vmem [thread:$0]  %s1, 256, %s32, [#allocation6], 128, 128, 8
    $region9: #{tpu_custom_call.1} parent=1 // pred_fallthru
      _
    // Predicated region
    $region10: #{tpu_custom_call.1} parent=1 // pred_check
      _
    $region11: #{tpu_custom_call.1} parent=1 // pred_check_branch
      %39 = sbr.rel (0) target = $region13
    $region12: #{tpu_custom_call.1} parent=1 // pred_region
      _
    $region13: #{tpu_custom_call.1} parent=1 // pred_fallthru
      _
    // Predicated region
    $region14: #{tpu_custom_call.1} parent=1 // pred_check
      _
    $region15: #{tpu_custom_call.1} parent=1 // pred_check_branch
      %41 = sbr.rel (0) target = $region17
    $region16: #{tpu_custom_call.1} parent=1 // pred_region
      %s43 = ssub.s32 6144, 6144
      %44 = vsyncadd [#allocation6], %s43
      %s45 = sshll.u32 [#allocation7], 4
      %s46 = int_to_ptr.vmem [resolvable:$true] %s45
      %51 = dma.hbm_to_vmem [thread:$0]  %s3, 6144, %s46, [#allocation6], 384, 384, 24
    $region17: #{tpu_custom_call.1} parent=1 // pred_fallthru
      _
    // Predicated region
    $region18: #{tpu_custom_call.1} parent=1 // pred_check
      _
    $region19: #{tpu_custom_call.1} parent=1 // pred_check_branch
      %53 = sbr.rel (0) target = $region21
    $region20: #{tpu_custom_call.1} parent=1 // pred_region
      _
    $region21: #{tpu_custom_call.1} parent=1 // pred_fallthru
      _
    // Predicated region
    $region22: #{tpu_custom_call.1} parent=1 // pred_check
      _
    $region23: #{tpu_custom_call.1} parent=1 // pred_check_branch
      %55 = sbr.rel (0) target = $region25
    $region24: #{tpu_custom_call.1} parent=1 // pred_region
      %s57 = ssub.s32 6144, 6144
      %58 = vsyncadd [#allocation9], %s57
      %s59 = sshll.u32 [#allocation8], 4
      %s60 = int_to_ptr.vmem [resolvable:$true] %s59
      %65 = dma.hbm_to_vmem [thread:$0]  %s5, 6144, %s60, [#allocation9], 128, 128, 8
    $region25: #{tpu_custom_call.1} parent=1 // pred_fallthru
      _
    // Predicated region
    $region26: #{tpu_custom_call.1} parent=1 // pred_check
      _
    $region27: #{tpu_custom_call.1} parent=1 // pred_check_branch
      %67 = sbr.rel (0) target = $region29
    $region28: #{tpu_custom_call.1} parent=1 // pred_region
      _
    $region29: #{tpu_custom_call.1} parent=1 // pred_fallthru
      _
    // Predicated region
    $region30: #{tpu_custom_call.1} parent=1 // pred_check
      _
    $region31: #{tpu_custom_call.1} parent=1 // pred_check_branch
      %69 = sbr.rel (0) target = $region33
    $region32: #{tpu_custom_call.1} parent=1 // pred_region
      %70 = dma.done [#allocation3], 128
    $region33: #{tpu_custom_call.1} parent=1 // pred_fallthru
      _
    // Predicated region
    $region34: #{tpu_custom_call.1} parent=1 // pred_check
      _
    $region35: #{tpu_custom_call.1} parent=1 // pred_check_branch
      %72 = sbr.rel (0) target = $region37
    $region36: #{tpu_custom_call.1} parent=1 // pred_region
      %73 = dma.done [#allocation6], 256
    $region37: #{tpu_custom_call.1} parent=1 // pred_fallthru
      _
    // Predicated region
    $region38: #{tpu_custom_call.1} parent=1 // pred_check
      _
    $region39: #{tpu_custom_call.1} parent=1 // pred_check_branch
      %75 = sbr.rel (0) target = $region41
    $region40: #{tpu_custom_call.1} parent=1 // pred_region
      %76 = dma.done [#allocation6], 6144
    $region41: #{tpu_custom_call.1} parent=1 // pred_fallthru
      _
    // Predicated region
    $region42: #{tpu_custom_call.1} parent=1 // pred_check
      _
    $region43: #{tpu_custom_call.1} parent=1 // pred_check_branch
      %78 = sbr.rel (0) target = $region45
    $region44: #{tpu_custom_call.1} parent=1 // pred_region
      %79 = dma.done [#allocation9], 6144
    $region45: #{tpu_custom_call.1} parent=1 // pred_fallthru
      _
    %v80 = vld [vmem:[#allocation2] sm:$0xff]
    %v81 = vld [vmem:[#allocation5] sm:$0xff]
    %v82 = vld [vmem:[#allocation5 + $0x8] sm:$0xff]
    %v83 = vld [vmem:[%s2] sm:$0x1]
    %v85 = vlaneseq
    %v86 = vshrl.u32 %v85, 7
    %v87 = vsub.s32 0, %v86
    %v88 = vrot.slane %v83, %v87
    %vm90 = vcmask 130048
    %v92 = vsel %vm90, %v80, 0
    %94 = vmatprep.subr.mxu0 0.0
    %95 = vmatpush1.msra.mxu0 0.0
    %96 = vmatprep.subr.mxu0 0.0
    %97 = vmatpush1.msra.mxu0 0.0
    %98 = vmatprep.subr.mxu0 0.0
    %99 = vmatpush1.msra.mxu0 0.0
    %100 = vmatprep.subr.mxu0 0.0
    %101 = vmatpush1.msra.mxu0 0.0
    %102 = vmatprep.subr.mxu0 0.0
    %103 = vmatpush1.msra.mxu0 0.0
    %104 = vmatprep.subr.mxu0 0.0
    %105 = vmatpush1.msra.mxu0 0.0
    %106 = vmatprep.subr.mxu0 0.0
    %107 = vmatpush1.msra.mxu0 0.0
    %108 = vmatprep.subr.mxu0 0.0
    %109 = vmatpush1.msra.mxu0 0.0
    %110 = vmatprep.subr.mxu0 0.0
    %111 = vmatpush1.msra.mxu0 0.0
    %112 = vmatprep.subr.mxu0 0.0
    %113 = vmatpush1.msra.mxu0 0.0
    %114 = vmatprep.subr.mxu0 0.0
    %115 = vmatpush1.msra.mxu0 0.0
    %116 = vmatprep.subr.mxu0 0.0
    %117 = vmatpush1.msra.mxu0 0.0
    %118 = vmatprep.subr.mxu0 0.0
    %119 = vmatpush1.msra.mxu0 0.0
    %120 = vmatprep.subr.mxu0 0.0
    %121 = vmatpush1.msra.mxu0 0.0
    %122 = vmatprep.subr.mxu0 0.0
    %123 = vmatpush1.msra.mxu0 %v82
    %124 = vmatprep.subr.mxu0 0.0
    %125 = vmatpush1.msra.mxu0 %v81
    %126 = vmatprep.subr.mxu0 0.0
    %127 = vmatpush2.msra.mxu0 0.0
    %128 = vmatprep.subr.mxu0 0.0
    %129 = vmatpush2.msra.mxu0 0.0
    %130 = vmatprep.subr.mxu0 0.0
    %131 = vmatpush2.msra.mxu0 0.0
    %132 = vmatprep.subr.mxu0 0.0
    %133 = vmatpush2.msra.mxu0 0.0
    %134 = vmatprep.subr.mxu0 0.0
    %135 = vmatpush2.msra.mxu0 0.0
    %136 = vmatprep.subr.mxu0 0.0
    %137 = vmatpush2.msra.mxu0 0.0
    %138 = vmatprep.subr.mxu0 0.0
    %139 = vmatpush2.msra.mxu0 0.0
    %140 = vmatprep.subr.mxu0 0.0
    %141 = vmatpush2.msra.mxu0 0.0
    %142 = vmatprep.subr.mxu0 0.0
    %143 = vmatpush2.msra.mxu0 0.0
    %144 = vmatprep.subr.mxu0 0.0
    %145 = vmatpush2.msra.mxu0 0.0
    %146 = vmatprep.subr.mxu0 0.0
    %147 = vmatpush2.msra.mxu0 0.0
    %148 = vmatprep.subr.mxu0 0.0
    %149 = vmatpush2.msra.mxu0 0.0
    %150 = vmatprep.subr.mxu0 0.0
    %151 = vmatpush2.msra.mxu0 0.0
    %152 = vmatprep.subr.mxu0 0.0
    %153 = vmatpush2.msra.mxu0 0.0
    %154 = vmatprep.subr.mxu0 0.0
    %155 = vmatpush2.msra.mxu0 0.0
    %156 = vmatprep.subr.mxu0 0.0
    %157 = vmatpush2.msra.mxu0 0.0
    %158 = vmatprep.mubr.f32.mxu0 0.0
    %159 = vmatmul.mubr.f32.gmra.mxu0 %v92
    %v160 = vpop.f32.mrf.mxu0
    %v161 = vadd.f32 %v88, %v160
    %v162 = vpop.f32.mrf.mxu0
    %163 = vdwg.mxu0
    %v164 = vmax.f32 %v161, 0.0
    %v165 = vld [vmem:[#allocation7] sm:$0xff]
    %v166 = vld [vmem:[#allocation7 + $0x8] sm:$0xff]
    %v167 = vld [vmem:[#allocation7 + $0x10] sm:$0xff]
    %v168 = vld [vmem:[#allocation7 + $0x18] sm:$0xff]
    %v169 = vld [vmem:[#allocation7 + $0x20] sm:$0xff]
    %v170 = vld [vmem:[#allocation7 + $0x28] sm:$0xff]
    %v171 = vld [vmem:[#allocation7 + $0x30] sm:$0xff]
    %v172 = vld [vmem:[#allocation7 + $0x38] sm:$0xff]
    %v173 = vld [vmem:[#allocation7 + $0x40] sm:$0xff]
    %v174 = vld [vmem:[#allocation7 + $0x48] sm:$0xff]
    %v175 = vld [vmem:[#allocation7 + $0x50] sm:$0xff]
    %v176 = vld [vmem:[#allocation7 + $0x58] sm:$0xff]
    %v177 = vld [vmem:[#allocation7 + $0x60] sm:$0xff]
    %v178 = vld [vmem:[#allocation7 + $0x68] sm:$0xff]
    %v179 = vld [vmem:[#allocation7 + $0x70] sm:$0xff]
    %v180 = vld [vmem:[#allocation7 + $0x78] sm:$0xff]
    %v181 = vld [vmem:[#allocation7 + $0x80] sm:$0xff]
    %v182 = vld [vmem:[#allocation7 + $0x88] sm:$0xff]
    %v183 = vld [vmem:[#allocation7 + $0x90] sm:$0xff]
    %v184 = vld [vmem:[#allocation7 + $0x98] sm:$0xff]
    %v185 = vld [vmem:[#allocation7 + $0xa0] sm:$0xff]
    %v186 = vld [vmem:[#allocation7 + $0xa8] sm:$0xff]
    %v187 = vld [vmem:[#allocation7 + $0xb0] sm:$0xff]
    %v188 = vld [vmem:[#allocation7 + $0xb8] sm:$0xff]
    %v189 = vld [vmem:[#allocation7 + $0xc0] sm:$0xff]
    %v190 = vld [vmem:[#allocation7 + $0xc8] sm:$0xff]
    %v191 = vld [vmem:[#allocation7 + $0xd0] sm:$0xff]
    %v192 = vld [vmem:[#allocation7 + $0xd8] sm:$0xff]
    %v193 = vld [vmem:[#allocation7 + $0xe0] sm:$0xff]
    %v194 = vld [vmem:[#allocation7 + $0xe8] sm:$0xff]
    %v195 = vld [vmem:[#allocation7 + $0xf0] sm:$0xff]
    %v196 = vld [vmem:[#allocation7 + $0xf8] sm:$0xff]
    %v197 = vld [vmem:[#allocation7 + $0x100] sm:$0xff]
    %v198 = vld [vmem:[#allocation7 + $0x108] sm:$0xff]
    %v199 = vld [vmem:[#allocation7 + $0x110] sm:$0xff]
    %v200 = vld [vmem:[#allocation7 + $0x118] sm:$0xff]
    %v201 = vld [vmem:[#allocation7 + $0x120] sm:$0xff]
    %v202 = vld [vmem:[#allocation7 + $0x128] sm:$0xff]
    %v203 = vld [vmem:[#allocation7 + $0x130] sm:$0xff]
    %v204 = vld [vmem:[#allocation7 + $0x138] sm:$0xff]
    %v205 = vld [vmem:[#allocation7 + $0x140] sm:$0xff]
    %v206 = vld [vmem:[#allocation7 + $0x148] sm:$0xff]
    %v207 = vld [vmem:[#allocation7 + $0x150] sm:$0xff]
    %v208 = vld [vmem:[#allocation7 + $0x158] sm:$0xff]
    %v209 = vld [vmem:[#allocation7 + $0x160] sm:$0xff]
    %v210 = vld [vmem:[#allocation7 + $0x168] sm:$0xff]
    %v211 = vld [vmem:[#allocation7 + $0x170] sm:$0xff]
    %v212 = vld [vmem:[#allocation7 + $0x178] sm:$0xff]
    %v213 = vld [vmem:[%s4] sm:$0x7]
    %v215 = vlaneseq
    %v216 = vshrl.u32 %v215, 7
    %v217 = vsub.s32 0, %v216
    %v218 = vrot.slane %v213, %v217
    %v219 = vlaneseq
    %v220 = vshrl.u32 %v219, 7
    %v221 = vsub.s32 1, %v220
    %v222 = vrot.slane %v213, %v221
    %v223 = vlaneseq
    %v224 = vshrl.u32 %v223, 7
    %v225 = vsub.s32 2, %v224
    %v226 = vrot.slane %v213, %v225
    %230 = vmatprep.subr.mxu0 %v211
    %231 = vmatpush1.msra.mxu0 %v210
    %232 = vmatprep.subr.mxu0 %v208
    %233 = vmatpush1.msra.mxu0 %v207
    %234 = vmatprep.subr.mxu0 %v205
    %235 = vmatpush1.msra.mxu0 %v204
    %236 = vmatprep.subr.mxu0 %v202
    %237 = vmatpush1.msra.mxu0 %v201
    %238 = vmatprep.subr.mxu0 %v199
    %239 = vmatpush1.msra.mxu0 %v198
    %240 = vmatprep.subr.mxu0 %v196
    %241 = vmatpush1.msra.mxu0 %v195
    %242 = vmatprep.subr.mxu0 %v193
    %243 = vmatpush1.msra.mxu0 %v192
    %244 = vmatprep.subr.mxu0 %v190
    %245 = vmatpush1.msra.mxu0 %v189
    %246 = vmatprep.subr.mxu0 %v187
    %247 = vmatpush1.msra.mxu0 %v186
    %248 = vmatprep.subr.mxu0 %v184
    %249 = vmatpush1.msra.mxu0 %v183
    %250 = vmatprep.subr.mxu0 %v181
    %251 = vmatpush1.msra.mxu0 %v180
    %252 = vmatprep.subr.mxu0 %v178
    %253 = vmatpush1.msra.mxu0 %v177
    %254 = vmatprep.subr.mxu0 %v175
    %255 = vmatpush1.msra.mxu0 %v174
    %256 = vmatprep.subr.mxu0 %v172
    %257 = vmatpush1.msra.mxu0 %v171
    %258 = vmatprep.subr.mxu0 %v169
    %259 = vmatpush1.msra.mxu0 %v168
    %260 = vmatprep.subr.mxu0 %v166
    %261 = vmatpush1.msra.mxu0 %v165
    %262 = vmatprep.subr.mxu0 0.0
    %263 = vmatpush2.msra.mxu0 0.0
    %264 = vmatprep.subr.mxu0 0.0
    %265 = vmatpush2.msra.mxu0 0.0
    %266 = vmatprep.subr.mxu0 0.0
    %267 = vmatpush2.msra.mxu0 0.0
    %268 = vmatprep.subr.mxu0 0.0
    %269 = vmatpush2.msra.mxu0 0.0
    %270 = vmatprep.subr.mxu0 0.0
    %271 = vmatpush2.msra.mxu0 0.0
    %272 = vmatprep.subr.mxu0 0.0
    %273 = vmatpush2.msra.mxu0 0.0
    %274 = vmatprep.subr.mxu0 0.0
    %275 = vmatpush2.msra.mxu0 0.0
    %276 = vmatprep.subr.mxu0 0.0
    %277 = vmatpush2.msra.mxu0 0.0
    %278 = vmatprep.subr.mxu0 0.0
    %279 = vmatpush2.msra.mxu0 0.0
    %280 = vmatprep.subr.mxu0 0.0
    %281 = vmatpush2.msra.mxu0 0.0
    %282 = vmatprep.subr.mxu0 0.0
    %283 = vmatpush2.msra.mxu0 0.0
    %284 = vmatprep.subr.mxu0 0.0
    %285 = vmatpush2.msra.mxu0 0.0
    %286 = vmatprep.subr.mxu0 0.0
    %287 = vmatpush2.msra.mxu0 0.0
    %288 = vmatprep.subr.mxu0 0.0
    %289 = vmatpush2.msra.mxu0 0.0
    %290 = vmatprep.subr.mxu0 0.0
    %291 = vmatpush2.msra.mxu0 0.0
    %292 = vmatprep.subr.mxu0 0.0
    %293 = vmatpush2.msra.mxu0 0.0
    %294 = vmatprep.mubr.f32.mxu0 0.0
    %295 = vmatmul.mubr.f32.gmra.mxu0 %v164
    %v296 = vpop.f32.mrf.mxu0
    %v297 = vadd.f32 %v218, %v296
    %v298 = vpop.f32.mrf.mxu0
    %v299 = vadd.f32 %v222, %v298
    %300 = vdwg.mxu0
    %301 = vmatprep.subr.mxu0 0.0
    %302 = vmatpush1.msra.mxu0 %v212
    %303 = vmatprep.subr.mxu0 0.0
    %304 = vmatpush1.msra.mxu0 %v209
    %305 = vmatprep.subr.mxu0 0.0
    %306 = vmatpush1.msra.mxu0 %v206
    %307 = vmatprep.subr.mxu0 0.0
    %308 = vmatpush1.msra.mxu0 %v203
    %309 = vmatprep.subr.mxu0 0.0
    %310 = vmatpush1.msra.mxu0 %v200
    %311 = vmatprep.subr.mxu0 0.0
    %312 = vmatpush1.msra.mxu0 %v197
    %313 = vmatprep.subr.mxu0 0.0
    %314 = vmatpush1.msra.mxu0 %v194
    %315 = vmatprep.subr.mxu0 0.0
    %316 = vmatpush1.msra.mxu0 %v191
    %317 = vmatprep.subr.mxu0 0.0
    %318 = vmatpush1.msra.mxu0 %v188
    %319 = vmatprep.subr.mxu0 0.0
    %320 = vmatpush1.msra.mxu0 %v185
    %321 = vmatprep.subr.mxu0 0.0
    %322 = vmatpush1.msra.mxu0 %v182
    %323 = vmatprep.subr.mxu0 0.0
    %324 = vmatpush1.msra.mxu0 %v179
    %325 = vmatprep.subr.mxu0 0.0
    %326 = vmatpush1.msra.mxu0 %v176
    %327 = vmatprep.subr.mxu0 0.0
    %328 = vmatpush1.msra.mxu0 %v173
    %329 = vmatprep.subr.mxu0 0.0
    %330 = vmatpush1.msra.mxu0 %v170
    %331 = vmatprep.subr.mxu0 0.0
    %332 = vmatpush1.msra.mxu0 %v167
    %333 = vmatprep.subr.mxu0 0.0
    %334 = vmatpush2.msra.mxu0 0.0
    %335 = vmatprep.subr.mxu0 0.0
    %336 = vmatpush2.msra.mxu0 0.0
    %337 = vmatprep.subr.mxu0 0.0
    %338 = vmatpush2.msra.mxu0 0.0
    %339 = vmatprep.subr.mxu0 0.0
    %340 = vmatpush2.msra.mxu0 0.0
    %341 = vmatprep.subr.mxu0 0.0
    %342 = vmatpush2.msra.mxu0 0.0
    %343 = vmatprep.subr.mxu0 0.0
    %344 = vmatpush2.msra.mxu0 0.0
    %345 = vmatprep.subr.mxu0 0.0
    %346 = vmatpush2.msra.mxu0 0.0
    %347 = vmatprep.subr.mxu0 0.0
    %348 = vmatpush2.msra.mxu0 0.0
    %349 = vmatprep.subr.mxu0 0.0
    %350 = vmatpush2.msra.mxu0 0.0
    %351 = vmatprep.subr.mxu0 0.0
    %352 = vmatpush2.msra.mxu0 0.0
    %353 = vmatprep.subr.mxu0 0.0
    %354 = vmatpush2.msra.mxu0 0.0
    %355 = vmatprep.subr.mxu0 0.0
    %356 = vmatpush2.msra.mxu0 0.0
    %357 = vmatprep.subr.mxu0 0.0
    %358 = vmatpush2.msra.mxu0 0.0
    %359 = vmatprep.subr.mxu0 0.0
    %360 = vmatpush2.msra.mxu0 0.0
    %361 = vmatprep.subr.mxu0 0.0
    %362 = vmatpush2.msra.mxu0 0.0
    %363 = vmatprep.subr.mxu0 0.0
    %364 = vmatpush2.msra.mxu0 0.0
    %365 = vmatprep.mubr.f32.mxu0 0.0
    %366 = vmatmul.mubr.f32.gmra.mxu0 %v164
    %v367 = vpop.f32.mrf.mxu0
    %v368 = vadd.f32 %v226, %v367
    %v369 = vpop.f32.mrf.mxu0
    %370 = vdwg.mxu0
    %v371 = vmax.f32 %v297, 0.0
    %v372 = vmax.f32 %v299, 0.0
    %v373 = vmax.f32 %v368, 0.0
    %v374 = vld [vmem:[#allocation8] sm:$0xff]
    %v375 = vld [vmem:[#allocation8 + $0x8] sm:$0xff]
    %v376 = vld [vmem:[#allocation8 + $0x10] sm:$0xff]
    %v377 = vld [vmem:[#allocation8 + $0x18] sm:$0xff]
    %v378 = vld [vmem:[#allocation8 + $0x20] sm:$0xff]
    %v379 = vld [vmem:[#allocation8 + $0x28] sm:$0xff]
    %v380 = vld [vmem:[#allocation8 + $0x30] sm:$0xff]
    %v381 = vld [vmem:[#allocation8 + $0x38] sm:$0xff]
    %v382 = vld [vmem:[#allocation8 + $0x40] sm:$0xff]
    %v383 = vld [vmem:[#allocation8 + $0x48] sm:$0xff]
    %v384 = vld [vmem:[#allocation8 + $0x50] sm:$0xff]
    %v385 = vld [vmem:[#allocation8 + $0x58] sm:$0xff]
    %v386 = vld [vmem:[#allocation8 + $0x60] sm:$0xff]
    %v387 = vld [vmem:[#allocation8 + $0x68] sm:$0xff]
    %v388 = vld [vmem:[#allocation8 + $0x70] sm:$0xff]
    %v389 = vld [vmem:[#allocation8 + $0x78] sm:$0xff]
    %v390 = vld [vmem:[#allocation8 + $0x80] sm:$0xff]
    %v391 = vld [vmem:[#allocation8 + $0x88] sm:$0xff]
    %v392 = vld [vmem:[#allocation8 + $0x90] sm:$0xff]
    %v393 = vld [vmem:[#allocation8 + $0x98] sm:$0xff]
    %v394 = vld [vmem:[#allocation8 + $0xa0] sm:$0xff]
    %v395 = vld [vmem:[#allocation8 + $0xa8] sm:$0xff]
    %v396 = vld [vmem:[#allocation8 + $0xb0] sm:$0xff]
    %v397 = vld [vmem:[#allocation8 + $0xb8] sm:$0xff]
    %v398 = vld [vmem:[#allocation8 + $0xc0] sm:$0xff]
    %v399 = vld [vmem:[#allocation8 + $0xc8] sm:$0xff]
    %v400 = vld [vmem:[#allocation8 + $0xd0] sm:$0xff]
    %v401 = vld [vmem:[#allocation8 + $0xd8] sm:$0xff]
    %v402 = vld [vmem:[#allocation8 + $0xe0] sm:$0xff]
    %v403 = vld [vmem:[#allocation8 + $0xe8] sm:$0xff]
    %v404 = vld [vmem:[#allocation8 + $0xf0] sm:$0xff]
    %v405 = vld [vmem:[#allocation8 + $0xf8] sm:$0xff]
    %v406 = vld [vmem:[#allocation8 + $0x100] sm:$0xff]
    %v407 = vld [vmem:[#allocation8 + $0x108] sm:$0xff]
    %v408 = vld [vmem:[#allocation8 + $0x110] sm:$0xff]
    %v409 = vld [vmem:[#allocation8 + $0x118] sm:$0xff]
    %v410 = vld [vmem:[#allocation8 + $0x120] sm:$0xff]
    %v411 = vld [vmem:[#allocation8 + $0x128] sm:$0xff]
    %v412 = vld [vmem:[#allocation8 + $0x130] sm:$0xff]
    %v413 = vld [vmem:[#allocation8 + $0x138] sm:$0xff]
    %v414 = vld [vmem:[#allocation8 + $0x140] sm:$0xff]
    %v415 = vld [vmem:[#allocation8 + $0x148] sm:$0xff]
    %v416 = vld [vmem:[#allocation8 + $0x150] sm:$0xff]
    %v417 = vld [vmem:[#allocation8 + $0x158] sm:$0xff]
    %v418 = vld [vmem:[#allocation8 + $0x160] sm:$0xff]
    %v419 = vld [vmem:[#allocation8 + $0x168] sm:$0xff]
    %v420 = vld [vmem:[#allocation8 + $0x170] sm:$0xff]
    %v421 = vld [vmem:[#allocation8 + $0x178] sm:$0xff]
    %v422 = vld [vmem:[%s6] sm:$0x1]
    %v424 = vlaneseq
    %v425 = vshrl.u32 %v424, 7
    %v426 = vsub.s32 0, %v425
    %v427 = vrot.slane %v422, %v426
    %429 = vmatprep.subr.mxu0 0.0
    %430 = vmatpush1.msra.mxu0 %v389
    %431 = vmatprep.subr.mxu0 0.0
    %432 = vmatpush1.msra.mxu0 %v388
    %433 = vmatprep.subr.mxu0 0.0
    %434 = vmatpush1.msra.mxu0 %v387
    %435 = vmatprep.subr.mxu0 0.0
    %436 = vmatpush1.msra.mxu0 %v386
    %437 = vmatprep.subr.mxu0 0.0
    %438 = vmatpush1.msra.mxu0 %v385
    %439 = vmatprep.subr.mxu0 0.0
    %440 = vmatpush1.msra.mxu0 %v384
    %441 = vmatprep.subr.mxu0 0.0
    %442 = vmatpush1.msra.mxu0 %v383
    %443 = vmatprep.subr.mxu0 0.0
    %444 = vmatpush1.msra.mxu0 %v382
    %445 = vmatprep.subr.mxu0 0.0
    %446 = vmatpush1.msra.mxu0 %v381
    %447 = vmatprep.subr.mxu0 0.0
    %448 = vmatpush1.msra.mxu0 %v380
    %449 = vmatprep.subr.mxu0 0.0
    %450 = vmatpush1.msra.mxu0 %v379
    %451 = vmatprep.subr.mxu0 0.0
    %452 = vmatpush1.msra.mxu0 %v378
    %453 = vmatprep.subr.mxu0 0.0
    %454 = vmatpush1.msra.mxu0 %v377
    %455 = vmatprep.subr.mxu0 0.0
    %456 = vmatpush1.msra.mxu0 %v376
    %457 = vmatprep.subr.mxu0 0.0
    %458 = vmatpush1.msra.mxu0 %v375
    %459 = vmatprep.subr.mxu0 0.0
    %460 = vmatpush1.msra.mxu0 %v374
    %461 = vmatprep.subr.mxu0 0.0
    %462 = vmatpush2.msra.mxu0 %v405
    %463 = vmatprep.subr.mxu0 0.0
    %464 = vmatpush2.msra.mxu0 %v404
    %465 = vmatprep.subr.mxu0 0.0
    %466 = vmatpush2.msra.mxu0 %v403
    %467 = vmatprep.subr.mxu0 0.0
    %468 = vmatpush2.msra.mxu0 %v402
    %469 = vmatprep.subr.mxu0 0.0
    %470 = vmatpush2.msra.mxu0 %v401
    %471 = vmatprep.subr.mxu0 0.0
    %472 = vmatpush2.msra.mxu0 %v400
    %473 = vmatprep.subr.mxu0 0.0
    %474 = vmatpush2.msra.mxu0 %v399
    %475 = vmatprep.subr.mxu0 0.0
    %476 = vmatpush2.msra.mxu0 %v398
    %477 = vmatprep.subr.mxu0 0.0
    %478 = vmatpush2.msra.mxu0 %v397
    %479 = vmatprep.subr.mxu0 0.0
    %480 = vmatpush2.msra.mxu0 %v396
    %481 = vmatprep.subr.mxu0 0.0
    %482 = vmatpush2.msra.mxu0 %v395
    %483 = vmatprep.subr.mxu0 0.0
    %484 = vmatpush2.msra.mxu0 %v394
    %485 = vmatprep.subr.mxu0 0.0
    %486 = vmatpush2.msra.mxu0 %v393
    %487 = vmatprep.subr.mxu0 0.0
    %488 = vmatpush2.msra.mxu0 %v392
    %489 = vmatprep.subr.mxu0 0.0
    %490 = vmatpush2.msra.mxu0 %v391
    %491 = vmatprep.subr.mxu0 0.0
    %492 = vmatpush2.msra.mxu0 %v390
    %493 = vmatprep.mubr.f32.mxu0 %v372
    %494 = vmatmul.mubr.f32.gmra.mxu0 %v371
    %v495 = vpop.f32.mrf.mxu0
    %v496 = vadd.f32 %v427, %v495
    %v497 = vpop.f32.mrf.mxu0
    %498 = vdwg.mxu0
    %499 = vmatprep.subr.mxu0 0.0
    %500 = vmatpush1.msra.mxu0 %v421
    %501 = vmatprep.subr.mxu0 0.0
    %502 = vmatpush1.msra.mxu0 %v420
    %503 = vmatprep.subr.mxu0 0.0
    %504 = vmatpush1.msra.mxu0 %v419
    %505 = vmatprep.subr.mxu0 0.0
    %506 = vmatpush1.msra.mxu0 %v418
    %507 = vmatprep.subr.mxu0 0.0
    %508 = vmatpush1.msra.mxu0 %v417
    %509 = vmatprep.subr.mxu0 0.0
    %510 = vmatpush1.msra.mxu0 %v416
    %511 = vmatprep.subr.mxu0 0.0
    %512 = vmatpush1.msra.mxu0 %v415
    %513 = vmatprep.subr.mxu0 0.0
    %514 = vmatpush1.msra.mxu0 %v414
    %515 = vmatprep.subr.mxu0 0.0
    %516 = vmatpush1.msra.mxu0 %v413
    %517 = vmatprep.subr.mxu0 0.0
    %518 = vmatpush1.msra.mxu0 %v412
    %519 = vmatprep.subr.mxu0 0.0
    %520 = vmatpush1.msra.mxu0 %v411
    %521 = vmatprep.subr.mxu0 0.0
    %522 = vmatpush1.msra.mxu0 %v410
    %523 = vmatprep.subr.mxu0 0.0
    %524 = vmatpush1.msra.mxu0 %v409
    %525 = vmatprep.subr.mxu0 0.0
    %526 = vmatpush1.msra.mxu0 %v408
    %527 = vmatprep.subr.mxu0 0.0
    %528 = vmatpush1.msra.mxu0 %v407
    %529 = vmatprep.subr.mxu0 0.0
    %530 = vmatpush1.msra.mxu0 %v406
    %531 = vmatprep.subr.mxu0 0.0
    %532 = vmatpush2.msra.mxu0 0.0
    %533 = vmatprep.subr.mxu0 0.0
    %534 = vmatpush2.msra.mxu0 0.0
    %535 = vmatprep.subr.mxu0 0.0
    %536 = vmatpush2.msra.mxu0 0.0
    %537 = vmatprep.subr.mxu0 0.0
    %538 = vmatpush2.msra.mxu0 0.0
    %539 = vmatprep.subr.mxu0 0.0
    %540 = vmatpush2.msra.mxu0 0.0
    %541 = vmatprep.subr.mxu0 0.0
    %542 = vmatpush2.msra.mxu0 0.0
    %543 = vmatprep.subr.mxu0 0.0
    %544 = vmatpush2.msra.mxu0 0.0
    %545 = vmatprep.subr.mxu0 0.0
    %546 = vmatpush2.msra.mxu0 0.0
    %547 = vmatprep.subr.mxu0 0.0
    %548 = vmatpush2.msra.mxu0 0.0
    %549 = vmatprep.subr.mxu0 0.0
    %550 = vmatpush2.msra.mxu0 0.0
    %551 = vmatprep.subr.mxu0 0.0
    %552 = vmatpush2.msra.mxu0 0.0
    %553 = vmatprep.subr.mxu0 0.0
    %554 = vmatpush2.msra.mxu0 0.0
    %555 = vmatprep.subr.mxu0 0.0
    %556 = vmatpush2.msra.mxu0 0.0
    %557 = vmatprep.subr.mxu0 0.0
    %558 = vmatpush2.msra.mxu0 0.0
    %559 = vmatprep.subr.mxu0 0.0
    %560 = vmatpush2.msra.mxu0 0.0
    %561 = vmatprep.subr.mxu0 0.0
    %562 = vmatpush2.msra.mxu0 0.0
    %563 = vmatprep.mubr.f32.mxu0 0.0
    %564 = vmatmul.mubr.f32.gmra.mxu0 %v373
    %v565 = vpop.f32.mrf.mxu0
    %v566 = vadd.f32 %v496, %v565
    %v567 = vpop.f32.mrf.mxu0
    %568 = vdwg.mxu0
    %v569 = vtanh.pop %v566
    %v570 = vmul.f32 %v569, 2.0
    %571 = vst [vmem:[#allocation10] sm:$0xff] %v570
    // Predicated region
    $region46: #{tpu_custom_call.1} parent=1 // pred_check
      _
    $region47: #{tpu_custom_call.1} parent=1 // pred_check_branch
      %573 = sbr.rel (0) target = $region49
    $region48: #{tpu_custom_call.1} parent=1 // pred_region
      %s575 = ssub.s32 128, 128
      %576 = vsyncadd [#allocation4], %s575
      %s578 = sshll.u32 [#allocation10], 4
      %s579 = int_to_ptr.vmem [resolvable:$true] %s578
      %581 = dma.vmem_to_hbm [thread:$0]  %s579, 128, %s7, [#allocation4]
    $region49: #{tpu_custom_call.1} parent=1 // pred_fallthru
      _
    // Predicated region
    $region50: #{tpu_custom_call.1} parent=1 // pred_check
      _
    $region51: #{tpu_custom_call.1} parent=1 // pred_check_branch
      %583 = sbr.rel (0) target = $region53
    $region52: #{tpu_custom_call.1} parent=1 // pred_region
      %584 = dma.done [#allocation4], 128
    $region53: #{tpu_custom_call.1} parent=1 // pred_fallthru
      _
    %585 = vsyncpa [#allocation3], 1
    %586 = vsyncpa [#allocation6], 1
    %587 = vsyncpa [#allocation9], 1
    %588 = vsyncpa [#allocation4], 1

</llo_original>
